<compile_context>
chip_gen: v7x
topology: tpu7x:2x2x1
jax: 0.10.0
libtpu: 0.0.40
codegen_flags: <defaults>
</compile_context>

<pallas_src>
import functools

import jax
import jax.numpy as jnp
from jax.experimental import pallas as pl
from jax.experimental.pallas import tpu as pltpu

_LANE = 128


def _round_up(x: int, m: int) -> int:
    return (x + m - 1) // m * m


def _sublane(dtype) -> int:
    # sublane packing: 8 for 4-byte, 16 for 2-byte, 32 for 1-byte dtypes
    return max(8, 32 // jnp.dtype(dtype).itemsize)


def _vmem_budget_bytes() -> int:
    """~75% of physical VMEM (48 MiB on v7x, 96 MiB on v5e/v6e); safe fallback otherwise."""
    try:
        cap = int(pltpu.get_tpu_info().vmem_capacity_bytes)
    except Exception:  # pragma: no cover - non-TPU / older jax
        cap = 64 * 2**20  # assume the smallest (v7x per-TC) physical VMEM
    return max(16 * 2**20, (cap * 3) // 4)


def _pick_tm(batch: int, sub: int):
    """Largest batch tile whose padding overhead is near-minimal (<= min + 12.5%)."""
    cands = [c for c in (512, 256, 128, 64, 32, 16, 8) if c >= sub and c % sub == 0]
    if not cands:
        cands = [_round_up(sub, 8)]
    min_pad = min(_round_up(batch, c) for c in cands)
    for c in cands:  # descending -> prefer the largest acceptable tile
        padded = _round_up(batch, c)
        if padded <= min_pad + min_pad // 8:
            return c, padded
    c = cands[-1]
    return c, _round_up(batch, c)


def _pick_divisor_tile(dim_pad: int, cands) -> int:
    for t in cands:
        if dim_pad % t == 0:
            return t
    return _LANE


# --------------------------------------------------------------------------------------------
# Kernels
# --------------------------------------------------------------------------------------------
def _linear_kernel_resident(x_ref, wt_ref, b_ref, o_ref):
    """Weight-resident path: one (tm, k_pad) x (k_pad, tn) MXU call per output tile.

    Grid = (N tiles [outer], batch tiles [inner]); the weight block index depends only on the
    outer axis, so Pallas keeps the weight slab resident in VMEM across the inner batch loop.
    """
    acc = jnp.dot(x_ref[...], wt_ref[...], preferred_element_type=jnp.float32)
    o_ref[...] = (acc + b_ref[...].astype(jnp.float32)).astype(o_ref.dtype)
    # nn.Identity() is a no-op.


def _linear_kernel_stream(x_ref, wt_ref, b_ref, o_ref, acc_ref):
    """Streaming-K path: grid = (batch tiles, N tiles, K tiles [innermost reduction])."""
    k = pl.program_id(2)

    @pl.when(k == 0)
    def _():
        acc_ref[...] = jnp.zeros_like(acc_ref)

    acc_ref[...] += jnp.dot(x_ref[...], wt_ref[...], preferred_element_type=jnp.float32)

    @pl.when(k == pl.num_programs(2) - 1)
    def _():
        o_ref[...] = (acc_ref[...] + b_ref[...].astype(jnp.float32)).astype(o_ref.dtype)


# --------------------------------------------------------------------------------------------
# Wrappers
# --------------------------------------------------------------------------------------------
def prepare_encoder_params(weight, bias, *, bf16_matmul: bool = False):
    """One-time param prep: transpose the PyTorch (latent, input) weight to (input, latent)
    and zero-pad both feature dims to multiples of 128 (lane-dense MXU tiles). With
    bf16_matmul=True the weight is stored in bf16 (HBM bytes halved); bias stays f32."""
    latent_dim, input_dim = weight.shape
    k_pad = _round_up(input_dim, _LANE)
    n_pad = _round_up(latent_dim, _LANE)
    w_dtype = jnp.bfloat16 if bf16_matmul else weight.dtype
    wt_pad = (jnp.zeros((k_pad, n_pad), w_dtype)
              .at[:input_dim, :latent_dim].set(weight.T.astype(w_dtype)))
    b_pad = (jnp.zeros((1, n_pad), jnp.float32)
             .at[0, :latent_dim].set(bias.astype(jnp.float32)))
    return wt_pad, b_pad


def encoder_apply(x, wt_pad, b_pad, latent_dim: int, *, bf16_matmul: bool = False):
    """y = x @ W^T + b with prepared (padded, pre-transposed) params."""
    k_pad, n_pad = wt_pad.shape
    lead_shape = x.shape[:-1]
    input_dim = x.shape[-1]
    out_dtype = x.dtype
    in_dtype = jnp.bfloat16 if bf16_matmul else x.dtype

    x2d = x.reshape((-1, input_dim)).astype(in_dtype)
    batch = x2d.shape[0]

    budget = _vmem_budget_bytes()
    isz = jnp.dtype(in_dtype).itemsize
    wsz = jnp.dtype(wt_pad.dtype).itemsize
    osz = jnp.dtype(out_dtype).itemsize

    # --- tile selection (budget-driven) -----------------------------------------------------
    tm, b_padded = _pick_tm(batch, _sublane(in_dtype))
    tn = _pick_divisor_tile(n_pad, (512, 256, 128))
    n_tiles = n_pad // tn
    b_tiles = b_padded // tm

    # Skip the activation zero-pad copy when shapes are already aligned.
    if batch == b_padded and input_dim == k_pad:
        x_pad = x2d
    else:
        x_pad = jnp.zeros((b_padded, k_pad), in_dtype).at[:batch, :input_dim].set(x2d)

    # --- fast path: full-K weight slab resident in VMEM across all batch tiles ---------------
    fast_need = (2 * (tm * k_pad * isz + k_pad * tn * wsz + tn * 4)
                 + 2 * tm * tn * osz)
    if fast_need <= budget:
        grid = (n_tiles, b_tiles)  # N outer so the weight block index is constant inner
        kernel = _linear_kernel_resident
        in_specs = [
            pl.BlockSpec((tm, k_pad), lambda j, i: (i, 0)),   # activations (streamed)
            pl.BlockSpec((k_pad, tn), lambda j, i: (0, j)),   # weight slab (resident over i)
            pl.BlockSpec((1, tn), lambda j, i: (0, j)),       # bias
        ]
        out_specs = pl.BlockSpec((tm, tn), lambda j, i: (i, j))
        scratch_shapes = []
        dim_sem = ("parallel", "parallel")
        weight_passes = 1
        vmem_need = fast_need
    else:
        # --- streaming-K fallback with a resident f32 accumulator ---------------------------
        tk, vmem_need = _LANE, None
        for cand in (1024, 512, 256, 128):
            if k_pad % cand != 0:
                continue
            need = (2 * (tm * cand * isz + cand * tn * wsz + tn * 4)
                    + 2 * tm * tn * osz + tm * tn * 4)
            if need <= budget:
                tk, vmem_need = cand, need
                break
        if vmem_need is None:
            vmem_need = (2 * (tm * tk * isz + tk * tn * wsz + tn * 4)
                         + 2 * tm * tn * osz + tm * tn * 4)
        grid = (b_tiles, n_tiles, k_pad // tk)
        kernel = _linear_kernel_stream
        in_specs = [
            pl.BlockSpec((tm, tk), lambda i, j, k: (i, k)),   # activations
            pl.BlockSpec((tk, tn), lambda i, j, k: (k, j)),   # weight (streamed per batch tile)
            pl.BlockSpec((1, tn), lambda i, j, k: (0, j)),    # bias
        ]
        out_specs = pl.BlockSpec((tm, tn), lambda i, j, k: (i, j))
        scratch_shapes = [pltpu.VMEM((tm, tn), jnp.float32)]
        dim_sem = ("parallel", "parallel", "arbitrary")
        weight_passes = b_tiles

    vmem_limit = int(min(budget, max(2 * vmem_need, 32 * 2**20)))

    cost = pl.CostEstimate(
        flops=2 * b_padded * k_pad * n_pad,
        transcendentals=0,
        bytes_accessed=(b_padded * k_pad * isz                    # activations (read once)
                        + weight_passes * k_pad * n_pad * wsz     # weight passes over HBM
                        + n_pad * 4                               # bias
                        + b_padded * n_pad * osz),                # output
    )

    out = pl.pallas_call(
        kernel,
        out_shape=jax.ShapeDtypeStruct((b_padded, n_pad), out_dtype),
        grid_spec=pltpu.PrefetchScalarGridSpec(
            num_scalar_prefetch=0,
            grid=grid,
            in_specs=in_specs,
            out_specs=out_specs,
            scratch_shapes=scratch_shapes,
        ),
        compiler_params=pltpu.CompilerParams(
            dimension_semantics=dim_sem,
            vmem_limit_bytes=vmem_limit,
        ),
        cost_estimate=cost,
    )(x_pad, wt_pad, b_pad)

    out = out[:batch, :latent_dim]
    return out.reshape(lead_shape + (latent_dim,))


def encoder_forward(x, weight, bias, *, bf16_matmul: bool = False):
    """Equivalent of Encoder.forward: Identity(Linear(x)).

    x:      (..., input_dim)
    weight: (latent_dim, input_dim)   -- PyTorch nn.Linear layout
    bias:   (latent_dim,)
    returns (..., latent_dim)

    Under jit the transpose/padding in prepare_encoder_params is constant-folded / hoisted by
    XLA; for repeated eager calls, call prepare_encoder_params once and reuse with
    encoder_apply.
    """
    latent_dim = weight.shape[0]
    wt_pad, b_pad = prepare_encoder_params(weight, bias, bf16_matmul=bf16_matmul)
    return encoder_apply(x, wt_pad, b_pad, latent_dim, bf16_matmul=bf16_matmul)


if __name__ == "__main__":
    key = jax.random.PRNGKey(0)
    k_x, k_x3, k_w, k_b = jax.random.split(key, 4)

    input_dim, latent_dim = 32, 16
    batch = 8

    # Deterministic "PyTorch-style" init: U(-1/sqrt(in), 1/sqrt(in)).
    bound = 1.0 / (input_dim ** 0.5)
    weight = jax.random.uniform(k_w, (latent_dim, input_dim),
                                minval=-bound, maxval=bound, dtype=jnp.float32)
    bias = jax.random.uniform(k_b, (latent_dim,),
                              minval=-bound, maxval=bound, dtype=jnp.float32)
    x = jax.random.normal(k_x, (batch, input_dim), dtype=jnp.float32)

    fwd = jax.jit(encoder_forward)
    y = jax.block_until_ready(fwd(x, weight, bias))

    # Reference check against plain JAX (same semantics as torch.nn.Linear).
    y_ref = x @ weight.T + bias
    assert y.shape == (batch, latent_dim)
    assert jnp.allclose(y, y_ref, atol=1e-5, rtol=1e-5)

    # Leading-dims reshape path (nn.Linear on (..., input_dim)).
    x3 = jax.random.normal(k_x3, (2, 3, input_dim), dtype=jnp.float32)
    y3 = jax.block_until_ready(fwd(x3, weight, bias))
    y3_ref = x3 @ weight.T + bias
    assert y3.shape == (2, 3, latent_dim)
    assert jnp.allclose(y3, y3_ref, atol=1e-5, rtol=1e-5)

    # Optional bf16-operand matmul path (f32 accumulate), looser tolerance.
    fwd_bf16 = jax.jit(functools.partial(encoder_forward, bf16_matmul=True))
    yb = jax.block_until_ready(fwd_bf16(x, weight, bias))
    assert yb.shape == (batch, latent_dim)
    assert jnp.allclose(yb, y_ref, atol=5e-2, rtol=5e-2)

    print("KERNEL_OK")
</pallas_src>

<mosaic_0001>
module attributes {stable_mosaic.version = 11 : i64} {
  func.func @_linear_kernel_resident(%arg0: i32, %arg1: i32, %arg2: memref<8x128xf32, #tpu.memory_space<vmem>>, %arg3: memref<128x128xf32, #tpu.memory_space<vmem>>, %arg4: memref<1x128xf32, #tpu.memory_space<vmem>>, %arg5: memref<8x128xf32, #tpu.memory_space<vmem>>) attributes {dimension_semantics = [#tpu.dimension_semantics<parallel>, #tpu.dimension_semantics<parallel>], iteration_bounds = array<i64: 1, 1>, scalar_prefetch = 0 : i64, scratch_operands = 0 : i64, tpu.core_type = #tpu.core_type<tc>, window_params = [{transform_indices = @transform_0, window_bounds = array<i64: 8, 128>}, {transform_indices = @transform_1, window_bounds = array<i64: 128, 128>}, {transform_indices = @transform_2, window_bounds = array<i64: 1, 128>}, {transform_indices = @transform_3, window_bounds = array<i64: 8, 128>}]} {
    %c0 = arith.constant 0 : index
    %c0_0 = arith.constant 0 : index
    %0 = vector.load %arg2[%c0, %c0_0] : memref<8x128xf32, #tpu.memory_space<vmem>>, vector<8x128xf32>
    %c0_1 = arith.constant 0 : index
    %c0_2 = arith.constant 0 : index
    %1 = vector.load %arg3[%c0_1, %c0_2] : memref<128x128xf32, #tpu.memory_space<vmem>>, vector<128x128xf32>
    %cst = arith.constant dense<0.000000e+00> : vector<8x128xf32>
    %2 = tpu.matmul %0, %1, %cst {dimension_numbers = #tpu.dot_dimension_numbers<[1], [0], [0], [1], [0, 0, 1, 1], [], []>} : vector<8x128xf32>, vector<128x128xf32>, vector<8x128xf32> -> vector<8x128xf32>
    %c0_3 = arith.constant 0 : index
    %c0_4 = arith.constant 0 : index
    %3 = vector.load %arg4[%c0_3, %c0_4] : memref<1x128xf32, #tpu.memory_space<vmem>>, vector<1x128xf32>
    %4 = vector.broadcast %3 : vector<1x128xf32> to vector<8x128xf32>
    %5 = arith.addf %2, %4 : vector<8x128xf32>
    %c0_5 = arith.constant 0 : index
    %c0_6 = arith.constant 0 : index
    %6 = vector.load %arg5[%c0_5, %c0_6] : memref<8x128xf32, #tpu.memory_space<vmem>>, vector<8x128xf32>
    tpu.vector_store %arg5[%c0_5, %c0_6], %5 {strides = array<i32>} : memref<8x128xf32, #tpu.memory_space<vmem>>, vector<8x128xf32>,
    return
  }
  func.func @transform_0(%arg0: i32, %arg1: i32) -> (i32, i32) {
    %c0_i32 = arith.constant 0 : i32
    %c0_i32_0 = arith.constant 0 : i32
    return %arg1, %c0_i32 : i32, i32
  }
  func.func @transform_1(%arg0: i32, %arg1: i32) -> (i32, i32) {
    %c0_i32 = arith.constant 0 : i32
    %c0_i32_0 = arith.constant 0 : i32
    return %c0_i32, %arg0 : i32, i32
  }
  func.func @transform_2(%arg0: i32, %arg1: i32) -> (i32, i32) {
    %c0_i32 = arith.constant 0 : i32
    %c0_i32_0 = arith.constant 0 : i32
    return %c0_i32, %arg0 : i32, i32
  }
  func.func @transform_3(%arg0: i32, %arg1: i32) -> (i32, i32) {
    %c0_i32 = arith.constant 0 : i32
    return %arg1, %arg0 : i32, i32
  }
}

</mosaic_0001>

<llo_original>
// kernel: encoder_forward.1
$region0: #{encoder_forward.1}
  #allocation0 [shape = 'u32[]', space=smem, size = 0x4, offset = 0x4, fixed_abs, tag = 'smem constant byte address 0x4 - core index']
  #allocation1 [shape = 'u32[144,128]{1,0:T(1,128)}', space=vmem, size = 0x12000, scoped, tag = 'internal scratch']
  %s0 = inlined_call_operand.vmem [shape: f32[8,128], index: 0, kind: input, shape index: {}]
  %s1 = inlined_call_operand.vmem [shape: f32[128,128], index: 1, kind: input, shape index: {}]
  %s2 = inlined_call_operand.vmem [shape: f32[1,128], index: 2, kind: input, shape index: {}]
  %s3 = inlined_call_operand.hbm [shape: f32[8,128], index: 3, kind: output, shape index: {}]
  %s4 = sld [smem:[#allocation0]]
  $region22: #{encoder_forward.1} parent=0
    _
  %s6 = ssub.s32 1, %s4
  %s7 = scalar_select 0, %s6, %s4
  $region1: #{encoder_forward.1} parent=0
    #allocation2 [shape = 'u8[4096]{0}', space=vmem, size = 0x1000, scoped, tag = 'output window, operand 0, single buffered']
    #allocation3 [shape = 's32[1]{0}', space=sflag, size = 0x4, scoped, tag = 'scoped memory for encoder_forward.1']
    %8 = vsyncpa [#allocation3], 0
    // Predicated region
    $region2: #{encoder_forward.1} parent=1 // pred_check
      _
    $region3: #{encoder_forward.1} parent=1 // pred_check_branch
      %10 = sbr.rel (0) target = $region5
    $region4: #{encoder_forward.1} parent=1 // pred_region
      _
    $region5: #{encoder_forward.1} parent=1 // pred_fallthru
      _
    // Predicated region
    $region6: #{encoder_forward.1} parent=1 // pred_check
      _
    $region7: #{encoder_forward.1} parent=1 // pred_check_branch
      %12 = sbr.rel (0) target = $region9
    $region8: #{encoder_forward.1} parent=1 // pred_region
      _
    $region9: #{encoder_forward.1} parent=1 // pred_fallthru
      _
    // Predicated region
    $region10: #{encoder_forward.1} parent=1 // pred_check
      _
    $region11: #{encoder_forward.1} parent=1 // pred_check_branch
      %14 = sbr.rel (0) target = $region13
    $region12: #{encoder_forward.1} parent=1 // pred_region
      _
    $region13: #{encoder_forward.1} parent=1 // pred_fallthru
      _
    %v15 = vld [vmem:[%s0] sm:$0xff]
    %v16 = vld [vmem:[%s1] sm:$0xff]
    %v17 = vld [vmem:[%s1 + $0x8] sm:$0xff]
    %v18 = vld [vmem:[%s1 + $0x10] sm:$0xff]
    %v19 = vld [vmem:[%s1 + $0x18] sm:$0xff]
    %v20 = vld [vmem:[%s1 + $0x20] sm:$0xff]
    %v21 = vld [vmem:[%s1 + $0x28] sm:$0xff]
    %v22 = vld [vmem:[%s1 + $0x30] sm:$0xff]
    %v23 = vld [vmem:[%s1 + $0x38] sm:$0xff]
    %v24 = vld [vmem:[%s1 + $0x40] sm:$0xff]
    %v25 = vld [vmem:[%s1 + $0x48] sm:$0xff]
    %v26 = vld [vmem:[%s1 + $0x50] sm:$0xff]
    %v27 = vld [vmem:[%s1 + $0x58] sm:$0xff]
    %v28 = vld [vmem:[%s1 + $0x60] sm:$0xff]
    %v29 = vld [vmem:[%s1 + $0x68] sm:$0xff]
    %v30 = vld [vmem:[%s1 + $0x70] sm:$0xff]
    %v31 = vld [vmem:[%s1 + $0x78] sm:$0xff]
    %v32 = vld [vmem:[%s2] sm:$0x1]
    %v34 = vlaneseq
    %v35 = vshrl.u32 %v34, 7
    %v36 = vsub.s32 0, %v35
    %v37 = vrot.slane %v32, %v36
    %39 = vmatprep.subr.mxu0 0.0
    %40 = vmatpush1.msra.mxu0 %v16
    %41 = vmatprep.subr.mxu0 0.0
    %42 = vmatpush1.msra.mxu0 %v17
    %43 = vmatprep.subr.mxu0 0.0
    %44 = vmatpush1.msra.mxu0 %v18
    %45 = vmatprep.subr.mxu0 0.0
    %46 = vmatpush1.msra.mxu0 %v19
    %47 = vmatprep.subr.mxu0 0.0
    %48 = vmatpush1.msra.mxu0 %v20
    %49 = vmatprep.subr.mxu0 0.0
    %50 = vmatpush1.msra.mxu0 %v21
    %51 = vmatprep.subr.mxu0 0.0
    %52 = vmatpush1.msra.mxu0 %v22
    %53 = vmatprep.subr.mxu0 0.0
    %54 = vmatpush1.msra.mxu0 %v23
    %55 = vmatprep.subr.mxu0 0.0
    %56 = vmatpush1.msra.mxu0 %v24
    %57 = vmatprep.subr.mxu0 0.0
    %58 = vmatpush1.msra.mxu0 %v25
    %59 = vmatprep.subr.mxu0 0.0
    %60 = vmatpush1.msra.mxu0 %v26
    %61 = vmatprep.subr.mxu0 0.0
    %62 = vmatpush1.msra.mxu0 %v27
    %63 = vmatprep.subr.mxu0 0.0
    %64 = vmatpush1.msra.mxu0 %v28
    %65 = vmatprep.subr.mxu0 0.0
    %66 = vmatpush1.msra.mxu0 %v29
    %67 = vmatprep.subr.mxu0 0.0
    %68 = vmatpush1.msra.mxu0 %v30
    %69 = vmatprep.subr.mxu0 0.0
    %70 = vmatpush1.msra.mxu0 %v31
    %71 = vmatprep.subr.mxu0 0.0
    %72 = vmatpush1.msra.mxu0 0.0
    %73 = vmatprep.subr.mxu0 0.0
    %74 = vmatpush1.msra.mxu0 0.0
    %75 = vmatprep.subr.mxu0 0.0
    %76 = vmatpush1.msra.mxu0 0.0
    %77 = vmatprep.subr.mxu0 0.0
    %78 = vmatpush1.msra.mxu0 0.0
    %79 = vmatprep.subr.mxu0 0.0
    %80 = vmatpush1.msra.mxu0 0.0
    %81 = vmatprep.subr.mxu0 0.0
    %82 = vmatpush1.msra.mxu0 0.0
    %83 = vmatprep.subr.mxu0 0.0
    %84 = vmatpush1.msra.mxu0 0.0
    %85 = vmatprep.subr.mxu0 0.0
    %86 = vmatpush1.msra.mxu0 0.0
    %87 = vmatprep.subr.mxu0 0.0
    %88 = vmatpush1.msra.mxu0 0.0
    %89 = vmatprep.subr.mxu0 0.0
    %90 = vmatpush1.msra.mxu0 0.0
    %91 = vmatprep.subr.mxu0 0.0
    %92 = vmatpush1.msra.mxu0 0.0
    %93 = vmatprep.subr.mxu0 0.0
    %94 = vmatpush1.msra.mxu0 0.0
    %95 = vmatprep.subr.mxu0 0.0
    %96 = vmatpush1.msra.mxu0 0.0
    %97 = vmatprep.subr.mxu0 0.0
    %98 = vmatpush1.msra.mxu0 0.0
    %99 = vmatprep.subr.mxu0 0.0
    %100 = vmatpush1.msra.mxu0 0.0
    %101 = vmatprep.subr.mxu0 0.0
    %102 = vmatpush1.msra.mxu0 0.0
    %103 = vmatprep.mubr.f32.mxu0 0.0
    %104 = vmatmul.mubr.f32.gmra.mrb[0].mxu0 %v15
    %v105 = vpop.f32.mrb[0].mxu0
    %v106 = vadd.f32 %v37, %v105
    %v107 = vpop.f32.mrb[0].mxu0
    %108 = vdwg.mxu0
    %109 = vst [vmem:[#allocation2] sm:$0xff] %v106
    // Predicated region
    $region14: #{encoder_forward.1} parent=1 // pred_check
      _
    $region15: #{encoder_forward.1} parent=1 // pred_check_branch
      %111 = sbr.rel (0) target = $region17
    $region16: #{encoder_forward.1} parent=1 // pred_region
      %s113 = ssub.s32 128, 128
      %114 = vsyncadd [#allocation3], %s113
      %s116 = sshll.u32 [#allocation2], 4
      %s117 = int_to_ptr.vmem [resolvable:$true] %s116
      %119 = dma.vmem_to_hbm [thread:$0]  %s117, 128, %s3, [#allocation3]
    $region17: #{encoder_forward.1} parent=1 // pred_fallthru
      _
    // Predicated region
    $region18: #{encoder_forward.1} parent=1 // pred_check
      _
    $region19: #{encoder_forward.1} parent=1 // pred_check_branch
      %121 = sbr.rel (0) target = $region21
    $region20: #{encoder_forward.1} parent=1 // pred_region
      %122 = dma.done [#allocation3], 128
    $region21: #{encoder_forward.1} parent=1 // pred_fallthru
      _
    %123 = vsyncpa [#allocation3], 1

</llo_original>
